<compile_context>
chip_gen: v5e
topology: v5e:2x2
jax: 0.10.0
libtpu: 0.0.40
codegen_flags: <defaults>
</compile_context>

<pallas_src>
import numpy as np
import jax
import jax.numpy as jnp
from jax import lax
from jax.experimental import pallas as pl
from jax.experimental.pallas import tpu as pltpu

# ----------------------------- hyper-parameters -----------------------------
MAX_M = 0.5
S_SCALE = 30.0
BASE_LOSS_FACTOR = 1.0
ADDITIONAL_DIVERSITY_FACTOR = -0.2
BASE_DIVERSITY_TEMPERATURE = 1.0  # per_cls_weights_diversity is None -> scalar T


def _vmem_limit_bytes():
    """Generation-aware scoped-VMEM limit (v5e/v6e 128 MiB, v7x 64 MiB phys)."""
    try:
        phys = int(pltpu.get_tpu_info().vmem_capacity_bytes)
    except Exception:
        phys = 64 << 20  # conservative: v7x per-TensorCore VMEM
    return int(max(32 << 20, min(phys * 3 // 4, 100 << 20)))


def _make_ride_loss_kernel(E, TB, C, B, T):
    """One batch tile (TB rows), all E experts vectorized."""
    use_T = abs(float(T) - 1.0) > 1e-12
    inv_T = 1.0 / float(T)
    T2 = float(T) * float(T)
    E_f = float(E)
    ragged = (B % TB) != 0  # last batch tile only partially valid

    def kernel(tgt_ref, m_ref, out_ref, exp_ref, loss_ref):
        tgt = tgt_ref[...]                                # (TB, 1) int32
        m_s = m_ref[...]                                  # (1, C)  f32 = s * m_list

        out_l = out_ref[...].astype(jnp.float32)          # (TB, C)
        ex_l = exp_ref[...].astype(jnp.float32)           # (E, TB, C)

        if ragged:
            i = pl.program_id(0)
            row_ids = lax.broadcasted_iota(jnp.int32, (TB, 1), 0) + i * TB
            row_valid = row_ids < B                       # (TB, 1) bool
            row_mask = row_valid.astype(jnp.float32)
            # Replace out-of-range rows with zeros BEFORE any transcendental,
            # so stale/garbage VMEM contents can never produce NaN/Inf.
            out_l = jnp.where(row_valid, out_l, 0.0)
            ex_l = jnp.where(row_valid[None], ex_l, 0.0)
        else:
            row_mask = None

        def masked_rowsum(x):                             # Σ over rows (and experts)
            if row_mask is None:
                return jnp.sum(x)
            m = row_mask if x.ndim == 2 else row_mask[None]
            return jnp.sum(x * m)

        # ---------------- expert-invariant work (once per tile) -------------
        class_iota = lax.broadcasted_iota(jnp.int32, (TB, C), 1)
        onehot = (class_iota == tgt).astype(jnp.float32)          # (TB, C)
        not_onehot = 1.0 - onehot
        sm_t = jnp.sum(onehot * m_s, axis=-1, keepdims=True)      # (TB,1) s*m[target]

        out_scaled = out_l * inv_T if use_T else out_l
        mo = jnp.max(out_scaled, axis=-1, keepdims=True)
        eo = jnp.exp(out_scaled - mo)
        so = jnp.sum(eo, axis=-1, keepdims=True)
        log_p = (out_scaled - mo) - jnp.log(so)                   # (TB, C)
        p = eo / so                                               # (TB, C)
        s1 = masked_rowsum(jnp.sum(p * log_p, axis=-1, keepdims=True))

        # --------- per-expert work: ONE exp pass over (E, TB, C) ------------
        m_row = jnp.max(ex_l, axis=-1, keepdims=True)             # (E, TB, 1)
        e = jnp.exp(ex_l - m_row)                                 # (E, TB, C)
        s_rest = jnp.sum(not_onehot[None] * e, axis=-1, keepdims=True)   # Σ_{c!=t}
        x_t = jnp.sum(onehot[None] * ex_l, axis=-1, keepdims=True)       # target logit

        # LDAM-margin cross entropy: only the target column shifts by s*m[t].
        e_t_new = jnp.exp(x_t - sm_t[None] - m_row)               # (E, TB, 1)
        lse_final = m_row + jnp.log(s_rest + e_t_new)
        nll = lse_final - (x_t - sm_t[None])
        ce_sum = masked_rowsum(nll)

        # Diversity KL: Σ_c p (log p - log q_e);  Σ_c p log q_e = Σ_c p*x - lse_q.
        if use_T:
            ex_scaled = ex_l * inv_T
            mq = jnp.max(ex_scaled, axis=-1, keepdims=True)
            lse_q = mq + jnp.log(jnp.sum(jnp.exp(ex_scaled - mq),
                                         axis=-1, keepdims=True))
        else:
            ex_scaled = ex_l
            e_t = jnp.sum(onehot[None] * e, axis=-1, keepdims=True)
            lse_q = m_row + jnp.log(s_rest + e_t)
        pe = jnp.sum(p[None] * ex_scaled, axis=-1, keepdims=True)  # (E, TB, 1)
        s2 = masked_rowsum(pe - lse_q)
        kl_sum = E_f * s1 - s2

        partial = (BASE_LOSS_FACTOR * ce_sum
                   + ADDITIONAL_DIVERSITY_FACTOR * T2 * kl_sum)
        # Lane-dense per-tile partial; wrapper reads [i, 0, 0] and sums.
        loss_ref[...] = jnp.broadcast_to(partial, loss_ref.shape).astype(jnp.float32)

    return kernel


def ride_loss_pallas(expert_logits, output_logits, target, m_list,
                     T=BASE_DIVERSITY_TEMPERATURE, max_block_rows=None):
    """expert_logits: (E, B, C) f32/bf16; output_logits: (B, C) f32/bf16;
       target: (B,) int; m_list: (C,) f32. Returns scalar f32 loss."""
    E, B, C = expert_logits.shape
    itemsize = jnp.dtype(expert_logits.dtype).itemsize

    vmem_limit = _vmem_limit_bytes()
    # dtype-aware tile sizing: double-buffered input blocks plus ~4 live f32
    # (E, TB, C) temporaries must fit comfortably under the scoped-VMEM limit.
    per_row_bytes = 2 * (E + 1) * C * itemsize + 4 * E * C * 4
    budget = vmem_limit // 2
    max_rows = max(8, (budget // max(per_row_bytes, 1)) // 8 * 8)
    if max_block_rows is not None:
        max_rows = min(max_rows, max(8, (max_block_rows // 8) * 8))
    TB = int(min(-(-B // 8) * 8, max_rows, 2048))
    NB = -(-B // TB)                       # cdiv: number of batch tiles

    # Only the tiny per-sample / per-class vectors are padded host-side; the
    # big logits tensors are consumed in place (no extra HBM copy).
    Bp = NB * TB
    tgt_p = jnp.pad(target.astype(jnp.int32), (0, Bp - B)).reshape(Bp, 1)
    m_s = (m_list.astype(jnp.float32) * S_SCALE).reshape(1, C)

    kernel = _make_ride_loss_kernel(E, TB, C, B, T)

    partials = pl.pallas_call(
        kernel,
        out_shape=jax.ShapeDtypeStruct((NB, 8, 128), jnp.float32),
        grid_spec=pltpu.PrefetchScalarGridSpec(
            num_scalar_prefetch=0,
            grid=(NB,),
            in_specs=[
                pl.BlockSpec((TB, 1), lambda i: (i, 0)),          # target tile
                pl.BlockSpec((1, C), lambda i: (0, 0)),           # s * m_list
                pl.BlockSpec((TB, C), lambda i: (i, 0)),          # ensemble logits
                pl.BlockSpec((E, TB, C), lambda i: (0, i, 0)),    # expert logits
            ],
            out_specs=pl.BlockSpec((1, 8, 128), lambda i: (i, 0, 0)),
        ),
        compiler_params=pltpu.CompilerParams(
            # tiles are fully independent -> megacore-splittable on v7x
            dimension_semantics=("parallel",),
            vmem_limit_bytes=int(vmem_limit)),
    )(tgt_p, m_s, output_logits, expert_logits)

    return jnp.sum(partials[:, 0, 0]) / jnp.float32(B)


# ----------------------------- pure-JAX reference ---------------------------
def ride_loss_ref(expert_logits, output_logits, target, m_list):
    E, B, C = expert_logits.shape
    T = BASE_DIVERSITY_TEMPERATURE
    loss = jnp.float32(0.0)
    onehot = jax.nn.one_hot(target, C, dtype=jnp.float32)
    for e in range(E):
        le = expert_logits[e].astype(jnp.float32)
        batch_m = jnp.sum(onehot * m_list[None, :], axis=1, keepdims=True)
        final = jnp.where(onehot.astype(bool), le - batch_m * S_SCALE, le)
        logp = jax.nn.log_softmax(final, axis=1)
        ce = -jnp.mean(jnp.sum(logp * onehot, axis=1))
        log_q = jax.nn.log_softmax(le / T, axis=1)
        log_p = jax.nn.log_softmax(output_logits.astype(jnp.float32) / T, axis=1)
        p = jnp.exp(log_p)
        kl = jnp.sum(p * (log_p - log_q)) / B
        loss = loss + BASE_LOSS_FACTOR * ce + ADDITIONAL_DIVERSITY_FACTOR * T * T * kl
    return loss


if __name__ == "__main__":
    E, C = 3, 16

    # Deterministic long-tailed class-count list -> m_list (LDAM margins).
    cls_num_list = np.array([int(round(100.0 * (0.7 ** i))) + 1 for i in range(C)],
                            dtype=np.float64)
    m_list_np = 1.0 / np.sqrt(np.sqrt(cls_num_list))
    m_list_np = m_list_np * (MAX_M / np.max(m_list_np))
    m_list = jnp.asarray(m_list_np, dtype=jnp.float32)

    # ---- case 1: f32 logits, batch divides the tile exactly ----
    B = 8
    k1, k2, k3 = jax.random.split(jax.random.PRNGKey(0), 3)
    expert_logits = jax.random.normal(k1, (E, B, C), dtype=jnp.float32) * 2.0
    output_logits = jnp.mean(expert_logits, axis=0) + \
        0.1 * jax.random.normal(k2, (B, C), dtype=jnp.float32)
    target = jax.random.randint(k3, (B,), 0, C, dtype=jnp.int32)

    got = jax.block_until_ready(
        ride_loss_pallas(expert_logits, output_logits, target, m_list))
    want = jax.block_until_ready(
        ride_loss_ref(expert_logits, output_logits, target, m_list))
    assert np.allclose(np.asarray(got), np.asarray(want),
                       rtol=1e-4, atol=1e-5), (got, want)

    # ---- case 2: bf16 logits, ragged last batch tile (TB=8, B=20) ----
    B2 = 20
    k4, k5, k6 = jax.random.split(jax.random.PRNGKey(1), 3)
    ex2 = (jax.random.normal(k4, (E, B2, C), dtype=jnp.float32) * 2.0
           ).astype(jnp.bfloat16)
    out2 = (jnp.mean(ex2.astype(jnp.float32), axis=0) +
            0.1 * jax.random.normal(k5, (B2, C), dtype=jnp.float32)
            ).astype(jnp.bfloat16)
    tgt2 = jax.random.randint(k6, (B2,), 0, C, dtype=jnp.int32)

    got2 = jax.block_until_ready(
        ride_loss_pallas(ex2, out2, tgt2, m_list, max_block_rows=8))
    want2 = jax.block_until_ready(ride_loss_ref(ex2, out2, tgt2, m_list))
    assert np.allclose(np.asarray(got2), np.asarray(want2),
                       rtol=1e-3, atol=1e-4), (got2, want2)

    print("KERNEL_OK")
</pallas_src>

<mosaic_0001>
module attributes {stable_mosaic.version = 11 : i64} {
  func.func @kernel(%arg0: i32, %arg1: memref<8x1xi32, #tpu.memory_space<vmem>>, %arg2: memref<1x16xf32, #tpu.memory_space<vmem>>, %arg3: memref<8x16xf32, #tpu.memory_space<vmem>>, %arg4: memref<3x8x16xf32, #tpu.memory_space<vmem>>, %arg5: memref<1x8x128xf32, #tpu.memory_space<vmem>>) attributes {dimension_semantics = [#tpu.dimension_semantics<parallel>], iteration_bounds = array<i64: 1>, scalar_prefetch = 0 : i64, scratch_operands = 0 : i64, tpu.core_type = #tpu.core_type<tc>, window_params = [{transform_indices = @transform_0, window_bounds = array<i64: 8, 1>}, {pipeline_mode = #tpu.pipeline_mode<synchronous>, transform_indices = @transform_1, window_bounds = array<i64: 1, 16>}, {transform_indices = @transform_2, window_bounds = array<i64: 8, 16>}, {transform_indices = @transform_3, window_bounds = array<i64: 3, 8, 16>}, {transform_indices = @transform_4, window_bounds = array<i64: 1, 8, 128>}]} {
    %c0 = arith.constant 0 : index
    %c0_0 = arith.constant 0 : index
    %0 = vector.load %arg1[%c0, %c0_0] : memref<8x1xi32, #tpu.memory_space<vmem>>, vector<8x1xi32>
    %c0_1 = arith.constant 0 : index
    %c0_2 = arith.constant 0 : index
    %1 = vector.load %arg2[%c0_1, %c0_2] : memref<1x16xf32, #tpu.memory_space<vmem>>, vector<1x16xf32>
    %c0_3 = arith.constant 0 : index
    %c0_4 = arith.constant 0 : index
    %2 = vector.load %arg3[%c0_3, %c0_4] : memref<8x16xf32, #tpu.memory_space<vmem>>, vector<8x16xf32>
    %c0_5 = arith.constant 0 : index
    %c0_6 = arith.constant 0 : index
    %c0_7 = arith.constant 0 : index
    %3 = vector.load %arg4[%c0_5, %c0_6, %c0_7] : memref<3x8x16xf32, #tpu.memory_space<vmem>>, vector<3x8x16xf32>
    %4 = tpu.iota {dimensions = array<i32: 1>} : vector<8x16xi32>
    %5 = vector.broadcast %0 : vector<8x1xi32> to vector<8x16xi32>
    %6 = arith.cmpi eq, %4, %5 : vector<8x16xi32>
    %7 = arith.extui %6 : vector<8x16xi1> to vector<8x16xi32>
    %8 = arith.sitofp %7 : vector<8x16xi32> to vector<8x16xf32>
    %cst = arith.constant 1.000000e+00 : f32
    %9 = vector.broadcast %cst : f32 to vector<8x16xf32>
    %10 = arith.subf %9, %8 : vector<8x16xf32>
    %11 = vector.broadcast %1 : vector<1x16xf32> to vector<8x16xf32>
    %12 = arith.mulf %8, %11 : vector<8x16xf32>
    %cst_8 = arith.constant dense<0.000000e+00> : vector<8xf32>
    %13 = vector.multi_reduction <add>, %12, %cst_8 [1] : vector<8x16xf32> to vector<8xf32>
    %14 = vector.shape_cast %13 : vector<8xf32> to vector<8x1xf32>
    %cst_9 = arith.constant dense<0xFF800000> : vector<8xf32>
    %15 = vector.multi_reduction <maximumf>, %2, %cst_9 [1] : vector<8x16xf32> to vector<8xf32>
    %16 = vector.shape_cast %15 : vector<8xf32> to vector<8x1xf32>
    %17 = vector.broadcast %16 : vector<8x1xf32> to vector<8x16xf32>
    %18 = arith.subf %2, %17 : vector<8x16xf32>
    %19 = math.exp %18 : vector<8x16xf32>
    %cst_10 = arith.constant dense<0.000000e+00> : vector<8xf32>
    %20 = vector.multi_reduction <add>, %19, %cst_10 [1] : vector<8x16xf32> to vector<8xf32>
    %21 = vector.shape_cast %20 : vector<8xf32> to vector<8x1xf32>
    %22 = vector.broadcast %16 : vector<8x1xf32> to vector<8x16xf32>
    %23 = arith.subf %2, %22 : vector<8x16xf32>
    %24 = math.log %21 : vector<8x1xf32>
    %25 = vector.broadcast %24 : vector<8x1xf32> to vector<8x16xf32>
    %26 = arith.subf %23, %25 : vector<8x16xf32>
    %27 = vector.broadcast %21 : vector<8x1xf32> to vector<8x16xf32>
    %28 = arith.divf %19, %27 : vector<8x16xf32>
    %29 = arith.mulf %28, %26 : vector<8x16xf32>
    %cst_11 = arith.constant dense<0.000000e+00> : vector<8xf32>
    %30 = vector.multi_reduction <add>, %29, %cst_11 [1] : vector<8x16xf32> to vector<8xf32>
    %31 = vector.shape_cast %30 : vector<8xf32> to vector<8x1xf32>
    %32 = vector.shape_cast %31 : vector<8x1xf32> to vector<1x8x1xf32>
    %cst_12 = arith.constant dense<0.000000e+00> : vector<1xf32>
    %33 = vector.multi_reduction <add>, %32, %cst_12 [1, 2] : vector<1x8x1xf32> to vector<1xf32>
    %34 = vector.shape_cast %33 : vector<1xf32> to vector<1x1x1xf32>
    %35 = vector.extract %34[0, 0, 0] : f32 from vector<1x1x1xf32>
    %cst_13 = arith.constant dense<0xFF800000> : vector<3x8xf32>
    %36 = vector.multi_reduction <maximumf>, %3, %cst_13 [2] : vector<3x8x16xf32> to vector<3x8xf32>
    %37 = vector.shape_cast %36 : vector<3x8xf32> to vector<3x8x1xf32>
    %38 = vector.broadcast %37 : vector<3x8x1xf32> to vector<3x8x16xf32>
    %39 = arith.subf %3, %38 : vector<3x8x16xf32>
    %40 = math.exp %39 : vector<3x8x16xf32>
    %41 = vector.shape_cast %10 : vector<8x16xf32> to vector<1x8x16xf32>
    %42 = vector.broadcast %41 : vector<1x8x16xf32> to vector<3x8x16xf32>
    %43 = arith.mulf %42, %40 : vector<3x8x16xf32>
    %cst_14 = arith.constant dense<0.000000e+00> : vector<3x8xf32>
    %44 = vector.multi_reduction <add>, %43, %cst_14 [2] : vector<3x8x16xf32> to vector<3x8xf32>
    %45 = vector.shape_cast %44 : vector<3x8xf32> to vector<3x8x1xf32>
    %46 = vector.shape_cast %8 : vector<8x16xf32> to vector<1x8x16xf32>
    %47 = vector.broadcast %46 : vector<1x8x16xf32> to vector<3x8x16xf32>
    %48 = arith.mulf %47, %3 : vector<3x8x16xf32>
    %cst_15 = arith.constant dense<0.000000e+00> : vector<3x8xf32>
    %49 = vector.multi_reduction <add>, %48, %cst_15 [2] : vector<3x8x16xf32> to vector<3x8xf32>
    %50 = vector.shape_cast %49 : vector<3x8xf32> to vector<3x8x1xf32>
    %51 = vector.shape_cast %14 : vector<8x1xf32> to vector<1x8x1xf32>
    %52 = vector.broadcast %51 : vector<1x8x1xf32> to vector<3x8x1xf32>
    %53 = arith.subf %50, %52 : vector<3x8x1xf32>
    %54 = arith.subf %53, %37 : vector<3x8x1xf32>
    %55 = math.exp %54 : vector<3x8x1xf32>
    %56 = arith.addf %45, %55 : vector<3x8x1xf32>
    %57 = math.log %56 : vector<3x8x1xf32>
    %58 = arith.addf %37, %57 : vector<3x8x1xf32>
    %59 = vector.shape_cast %14 : vector<8x1xf32> to vector<1x8x1xf32>
    %60 = vector.broadcast %59 : vector<1x8x1xf32> to vector<3x8x1xf32>
    %61 = arith.subf %50, %60 : vector<3x8x1xf32>
    %62 = arith.subf %58, %61 : vector<3x8x1xf32>
    %63 = vector.shape_cast %62 : vector<3x8x1xf32> to vector<1x3x8x1xf32>
    %cst_16 = arith.constant dense<0.000000e+00> : vector<1xf32>
    %64 = vector.multi_reduction <add>, %63, %cst_16 [1, 2, 3] : vector<1x3x8x1xf32> to vector<1xf32>
    %65 = vector.shape_cast %64 : vector<1xf32> to vector<1x1x1x1xf32>
    %66 = vector.extract %65[0, 0, 0, 0] : f32 from vector<1x1x1x1xf32>
    %67 = vector.shape_cast %8 : vector<8x16xf32> to vector<1x8x16xf32>
    %68 = vector.broadcast %67 : vector<1x8x16xf32> to vector<3x8x16xf32>
    %69 = arith.mulf %68, %40 : vector<3x8x16xf32>
    %cst_17 = arith.constant dense<0.000000e+00> : vector<3x8xf32>
    %70 = vector.multi_reduction <add>, %69, %cst_17 [2] : vector<3x8x16xf32> to vector<3x8xf32>
    %71 = vector.shape_cast %70 : vector<3x8xf32> to vector<3x8x1xf32>
    %72 = arith.addf %45, %71 : vector<3x8x1xf32>
    %73 = math.log %72 : vector<3x8x1xf32>
    %74 = arith.addf %37, %73 : vector<3x8x1xf32>
    %75 = vector.shape_cast %28 : vector<8x16xf32> to vector<1x8x16xf32>
    %76 = vector.broadcast %75 : vector<1x8x16xf32> to vector<3x8x16xf32>
    %77 = arith.mulf %76, %3 : vector<3x8x16xf32>
    %cst_18 = arith.constant dense<0.000000e+00> : vector<3x8xf32>
    %78 = vector.multi_reduction <add>, %77, %cst_18 [2] : vector<3x8x16xf32> to vector<3x8xf32>
    %79 = vector.shape_cast %78 : vector<3x8xf32> to vector<3x8x1xf32>
    %80 = arith.subf %79, %74 : vector<3x8x1xf32>
    %81 = vector.shape_cast %80 : vector<3x8x1xf32> to vector<1x3x8x1xf32>
    %cst_19 = arith.constant dense<0.000000e+00> : vector<1xf32>
    %82 = vector.multi_reduction <add>, %81, %cst_19 [1, 2, 3] : vector<1x3x8x1xf32> to vector<1xf32>
    %83 = vector.shape_cast %82 : vector<1xf32> to vector<1x1x1x1xf32>
    %84 = vector.extract %83[0, 0, 0, 0] : f32 from vector<1x1x1x1xf32>
    %cst_20 = arith.constant 3.000000e+00 : f32
    %85 = arith.mulf %cst_20, %35 : f32
    %86 = arith.subf %85, %84 : f32
    %cst_21 = arith.constant 1.000000e+00 : f32
    %87 = arith.mulf %cst_21, %66 : f32
    %cst_22 = arith.constant -2.000000e-01 : f32
    %88 = arith.mulf %cst_22, %86 : f32
    %89 = arith.addf %87, %88 : f32
    %90 = vector.broadcast %89 : f32 to vector<1x8x128xf32>
    %c0_23 = arith.constant 0 : index
    %c0_24 = arith.constant 0 : index
    %c0_25 = arith.constant 0 : index
    %91 = vector.load %arg5[%c0_23, %c0_24, %c0_25] : memref<1x8x128xf32, #tpu.memory_space<vmem>>, vector<1x8x128xf32>
    tpu.vector_store %arg5[%c0_23, %c0_24, %c0_25], %90 {strides = array<i32>} : memref<1x8x128xf32, #tpu.memory_space<vmem>>, vector<1x8x128xf32>,
    return
  }
  func.func @transform_0(%arg0: i32) -> (i32, i32) {
    %c0_i32 = arith.constant 0 : i32
    %c0_i32_0 = arith.constant 0 : i32
    return %arg0, %c0_i32 : i32, i32
  }
  func.func @transform_1(%arg0: i32) -> (i32, i32) {
    %c0_i32 = arith.constant 0 : i32
    %c0_i32_0 = arith.constant 0 : i32
    %c0_i32_1 = arith.constant 0 : i32
    return %c0_i32, %c0_i32_0 : i32, i32
  }
  func.func @transform_2(%arg0: i32) -> (i32, i32) {
    %c0_i32 = arith.constant 0 : i32
    %c0_i32_0 = arith.constant 0 : i32
    return %arg0, %c0_i32 : i32, i32
  }
  func.func @transform_3(%arg0: i32) -> (i32, i32, i32) {
    %c0_i32 = arith.constant 0 : i32
    %c0_i32_0 = arith.constant 0 : i32
    %c0_i32_1 = arith.constant 0 : i32
    return %c0_i32, %arg0, %c0_i32_0 : i32, i32, i32
  }
  func.func @transform_4(%arg0: i32) -> (i32, i32, i32) {
    %c0_i32 = arith.constant 0 : i32
    %c0_i32_0 = arith.constant 0 : i32
    %c0_i32_1 = arith.constant 0 : i32
    return %arg0, %c0_i32, %c0_i32_0 : i32, i32, i32
  }
}

</mosaic_0001>

<llo_original>
// kernel: tpu_custom_call.1
$region0: #{tpu_custom_call.1}
  #allocation0 [shape = 'u32[]', space=smem, size = 0x4, offset = 0x4, fixed_abs, tag = 'smem constant byte address 0x4 - core index']
  #allocation1 [shape = 'u32[72,128]{1,0:T(1,128)}', space=vmem, size = 0x9000, scoped, tag = 'internal scratch']
  %s0 = inlined_call_operand.vmem [shape: s32[8,1], index: 0, kind: input, shape index: {}]
  %s1 = inlined_call_operand.vmem [shape: f32[1,16], index: 1, kind: input, shape index: {}]
  %s2 = inlined_call_operand.vmem [shape: f32[8,16], index: 2, kind: input, shape index: {}]
  %s3 = inlined_call_operand.hbm [shape: f32[3,8,16], index: 3, kind: input, shape index: {}]
  %s4 = inlined_call_operand.hbm [shape: f32[1,8,128], index: 4, kind: output, shape index: {}]
  %s5 = sld [smem:[#allocation0]]
  $region30: #{tpu_custom_call.1} parent=0
    _
  %s7 = ssub.s32 1, %s5
  %s8 = scalar_select 0, %s7, %s5
  $region1: #{tpu_custom_call.1} parent=0
    #allocation2 [shape = 'u8[12288]{0}', space=vmem, size = 0x3000, scoped, tag = 'input window, operand 3, single buffered']
    #allocation3 [shape = 's32[1]{0}', space=sflag, size = 0x4, scoped, tag = 'scoped memory for tpu_custom_call.1']
    #allocation4 [shape = 's32[1]{0}', space=sflag, size = 0x4, scoped, tag = 'scoped memory for tpu_custom_call.1']
    #allocation5 [shape = 'u8[4096]{0}', space=vmem, size = 0x1000, scoped, tag = 'output window, operand 0, single buffered']
    %9 = vsyncpa [#allocation3], 0
    %10 = vsyncpa [#allocation4], 0
    // Predicated region
    $region2: #{tpu_custom_call.1} parent=1 // pred_check
      _
    $region3: #{tpu_custom_call.1} parent=1 // pred_check_branch
      %12 = sbr.rel (0) target = $region5
    $region4: #{tpu_custom_call.1} parent=1 // pred_region
      _
    $region5: #{tpu_custom_call.1} parent=1 // pred_fallthru
      _
    // Predicated region
    $region6: #{tpu_custom_call.1} parent=1 // pred_check
      _
    $region7: #{tpu_custom_call.1} parent=1 // pred_check_branch
      %14 = sbr.rel (0) target = $region9
    $region8: #{tpu_custom_call.1} parent=1 // pred_region
      _
    $region9: #{tpu_custom_call.1} parent=1 // pred_fallthru
      _
    // Predicated region
    $region10: #{tpu_custom_call.1} parent=1 // pred_check
      _
    $region11: #{tpu_custom_call.1} parent=1 // pred_check_branch
      %16 = sbr.rel (0) target = $region13
    $region12: #{tpu_custom_call.1} parent=1 // pred_region
      _
    $region13: #{tpu_custom_call.1} parent=1 // pred_fallthru
      _
    // Predicated region
    $region14: #{tpu_custom_call.1} parent=1 // pred_check
      _
    $region15: #{tpu_custom_call.1} parent=1 // pred_check_branch
      %18 = sbr.rel (0) target = $region17
    $region16: #{tpu_custom_call.1} parent=1 // pred_region
      %20 = vsyncadd [#allocation3], 0
      %s21 = sshll.u32 %s3, 4
      %s22 = int_to_ptr.hbm [resolvable:$true] %s21
      %s23 = sshll.u32 [#allocation2], 4
      %s24 = int_to_ptr.vmem [resolvable:$true] %s23
      %29 = dma.hbm_to_vmem [thread:$0]  %s22, 384, %s24, [#allocation3], 128, 128, 8
    $region17: #{tpu_custom_call.1} parent=1 // pred_fallthru
      _
    // Predicated region
    $region18: #{tpu_custom_call.1} parent=1 // pred_check
      _
    $region19: #{tpu_custom_call.1} parent=1 // pred_check_branch
      %31 = sbr.rel (0) target = $region21
    $region20: #{tpu_custom_call.1} parent=1 // pred_region
      %33 = dma.done [#allocation3], 384
    $region21: #{tpu_custom_call.1} parent=1 // pred_fallthru
      _
    %v34 = vld [vmem:[%s0] sm:$0xff]
    %v35 = vld [vmem:[%s1] sm:$0x1]
    %v36 = vld [vmem:[%s2] sm:$0xff]
    %v37 = vld [vmem:[#allocation2] sm:$0xff]
    %v38 = vld [vmem:[#allocation2 + $0x8] sm:$0xff]
    %v39 = vld [vmem:[#allocation2 + $0x10] sm:$0xff]
    %v40 = vlaneseq
    %v41 = vand.u32 %v40, 127
    %42 = vset.pattern.permute.xlu0 0
    %43 = vperm.xlu0 %42, %v34
    %v44 = vpop.permute.xlu0 %43
    %vm45 = vcmp.eq.s32.totalorder %v41, %v44
    %v46 = vsel %vm45, 1, 0
    %v47 = vcvt.s32.f32 %v46
    %v48 = vsub.f32 1.0, %v47
    %v50 = vperm.slane %v35, 0
    %v52 = vmul.f32 %v47, %v50
    %vm53 = vcmask 130048
    %v54 = vsel %vm53, %v52, 0.0
    %55 = vadd.xlane.f32.xlu0 %v54
    %v56 = vpop.xlane.xlu0 %55
    %v57 = vsel %vm53, %v36, -inf
    %58 = vmax.xlane.f32.xlu0 %v57
    %v59 = vpop.xlane.xlu0 %58
    %v60 = vsub.f32 %v36, %v59
    %v61 = vmul.f32 %v60, 1.442695
    %v62 = vpow.pop %v61
    %v63 = vsel %vm53, %v62, 0.0
    %64 = vadd.xlane.f32.xlu0 %v63
    %v65 = vpop.xlane.xlu0 %64
    %v66 = vlog2.pop %v65
    %v67 = vmul.f32 %v66, 0.6931472
    %v68 = vsub.f32 %v60, %v67
    %v69 = vrcp.pop %v65
    %v70 = vmul.f32 %v65, %v69
    %v71 = vsub.f32 1.0, %v70
    %v72 = vmul.f32 %v69, %v71
    %v73 = vadd.f32 %v69, %v72
    %vm74 = vweird.f32 %v65
    %vm75 = vweird.f32 %v69
    %vm76 = vmor %vm74, %vm75
    %v77 = vsel %vm76, %v69, %v73
    %v78 = vand.u32 2147483647, %v65
    %vm79 = vcmp.eq.f32.partialorder %v78, 8.507059e+37
    %v80 = vand.u32 %v65, 2147483648
    %v81 = vor.u32 1.1754944e-38, %v80
    %v82 = vsel %vm79, %v81, %v77
    %v83 = vmul.f32 %v62, %v82
    %v84 = vmul.f32 %v83, %v68
    %v85 = vsel %vm53, %v84, 0.0
    %86 = vadd.xlane.f32.xlu0 %v85
    %v87 = vpop.xlane.xlu0 %86
    %vm88 = vcmask 7168
    %v89 = vsel %vm88, %v87, 0.0
    %90 = vadd.xlane.f32.xlu0 %v89
    %v91 = vpop.xlane.xlu0 %90
    %v92 = vrot.slane %v91, 4
    %v93 = vadd.f32 %v91, %v92
    %v94 = vrot.slane %v93, 2
    %v95 = vadd.f32 %v93, %v94
    %v96 = vrot.slane %v95, 1
    %v97 = vadd.f32 %v95, %v96
    %s98 = vtos %v97
    %v99 = vsel %vm53, %v37, -inf
    %100 = vmax.xlane.f32.xlu0 %v99
    %v101 = vpop.xlane.xlu0 %100
    %v102 = vsel %vm53, %v38, -inf
    %103 = vmax.xlane.f32.xlu0 %v102
    %v104 = vpop.xlane.xlu0 %103
    %v105 = vsel %vm53, %v39, -inf
    %106 = vmax.xlane.f32.xlu0 %v105
    %v107 = vpop.xlane.xlu0 %106
    %v108 = vsub.f32 %v37, %v101
    %v109 = vsub.f32 %v38, %v104
    %v110 = vsub.f32 %v39, %v107
    %v111 = vmul.f32 %v108, 1.442695
    %v112 = vpow.pop %v111
    %v113 = vmul.f32 %v109, 1.442695
    %v114 = vpow.pop %v113
    %v115 = vmul.f32 %v110, 1.442695
    %v116 = vpow.pop %v115
    %v117 = vmul.f32 %v48, %v112
    %v118 = vmul.f32 %v48, %v114
    %v119 = vmul.f32 %v48, %v116
    %v120 = vsel %vm53, %v117, 0.0
    %121 = vadd.xlane.f32.xlu0 %v120
    %v122 = vpop.xlane.xlu0 %121
    %v123 = vsel %vm53, %v118, 0.0
    %124 = vadd.xlane.f32.xlu0 %v123
    %v125 = vpop.xlane.xlu0 %124
    %v126 = vsel %vm53, %v119, 0.0
    %127 = vadd.xlane.f32.xlu0 %v126
    %v128 = vpop.xlane.xlu0 %127
    %v129 = vmul.f32 %v47, %v37
    %v130 = vmul.f32 %v47, %v38
    %v131 = vmul.f32 %v47, %v39
    %v132 = vsel %vm53, %v129, 0.0
    %133 = vadd.xlane.f32.xlu0 %v132
    %v134 = vpop.xlane.xlu0 %133
    %v135 = vsel %vm53, %v130, 0.0
    %136 = vadd.xlane.f32.xlu0 %v135
    %v137 = vpop.xlane.xlu0 %136
    %v138 = vsel %vm53, %v131, 0.0
    %139 = vadd.xlane.f32.xlu0 %v138
    %v140 = vpop.xlane.xlu0 %139
    %v141 = vsub.f32 %v134, %v56
    %v142 = vsub.f32 %v137, %v56
    %v143 = vsub.f32 %v140, %v56
    %v144 = vsub.f32 %v141, %v101
    %v145 = vsub.f32 %v142, %v104
    %v146 = vsub.f32 %v143, %v107
    %v147 = vmul.f32 %v144, 1.442695
    %v148 = vpow.pop %v147
    %v149 = vmul.f32 %v145, 1.442695
    %v150 = vpow.pop %v149
    %v151 = vmul.f32 %v146, 1.442695
    %v152 = vpow.pop %v151
    %v153 = vadd.f32 %v122, %v148
    %v154 = vadd.f32 %v125, %v150
    %v155 = vadd.f32 %v128, %v152
    %v156 = vlog2.pop %v153
    %v157 = vmul.f32 %v156, 0.6931472
    %v158 = vlog2.pop %v154
    %v159 = vmul.f32 %v158, 0.6931472
    %v160 = vlog2.pop %v155
    %v161 = vmul.f32 %v160, 0.6931472
    %v162 = vadd.f32 %v101, %v157
    %v163 = vadd.f32 %v104, %v159
    %v164 = vadd.f32 %v107, %v161
    %v165 = vsub.f32 %v162, %v141
    %v166 = vsub.f32 %v163, %v142
    %v167 = vsub.f32 %v164, %v143
    %v168 = vsel %vm88, %v165, 0.0
    %v169 = vsel %vm88, %v166, 0.0
    %v170 = vadd.f32 %v168, %v169
    %v171 = vsel %vm88, %v167, 0.0
    %v172 = vadd.f32 %v170, %v171
    %173 = vadd.xlane.f32.xlu0 %v172
    %v174 = vpop.xlane.xlu0 %173
    %v175 = vrot.slane %v174, 4
    %v176 = vadd.f32 %v174, %v175
    %v177 = vrot.slane %v176, 2
    %v178 = vadd.f32 %v176, %v177
    %v179 = vrot.slane %v178, 1
    %v180 = vadd.f32 %v178, %v179
    %s181 = vtos %v180
    %v182 = vmul.f32 %v47, %v112
    %v183 = vmul.f32 %v47, %v114
    %v184 = vmul.f32 %v47, %v116
    %v185 = vsel %vm53, %v182, 0.0
    %186 = vadd.xlane.f32.xlu0 %v185
    %v187 = vpop.xlane.xlu0 %186
    %v188 = vsel %vm53, %v183, 0.0
    %189 = vadd.xlane.f32.xlu0 %v188
    %v190 = vpop.xlane.xlu0 %189
    %v191 = vsel %vm53, %v184, 0.0
    %192 = vadd.xlane.f32.xlu0 %v191
    %v193 = vpop.xlane.xlu0 %192
    %v194 = vadd.f32 %v122, %v187
    %v195 = vadd.f32 %v125, %v190
    %v196 = vadd.f32 %v128, %v193
    %v197 = vlog2.pop %v194
    %v198 = vmul.f32 %v197, 0.6931472
    %v199 = vlog2.pop %v195
    %v200 = vmul.f32 %v199, 0.6931472
    %v201 = vlog2.pop %v196
    %v202 = vmul.f32 %v201, 0.6931472
    %v203 = vadd.f32 %v101, %v198
    %v204 = vadd.f32 %v104, %v200
    %v205 = vadd.f32 %v107, %v202
    %v206 = vmul.f32 %v83, %v37
    %v207 = vmul.f32 %v83, %v38
    %v208 = vmul.f32 %v83, %v39
    %v209 = vsel %vm53, %v206, 0.0
    %210 = vadd.xlane.f32.xlu0 %v209
    %v211 = vpop.xlane.xlu0 %210
    %v212 = vsel %vm53, %v207, 0.0
    %213 = vadd.xlane.f32.xlu0 %v212
    %v214 = vpop.xlane.xlu0 %213
    %v215 = vsel %vm53, %v208, 0.0
    %216 = vadd.xlane.f32.xlu0 %v215
    %v217 = vpop.xlane.xlu0 %216
    %v218 = vsub.f32 %v211, %v203
    %v219 = vsub.f32 %v214, %v204
    %v220 = vsub.f32 %v217, %v205
    %v221 = vsel %vm88, %v218, 0.0
    %v222 = vsel %vm88, %v219, 0.0
    %v223 = vadd.f32 %v221, %v222
    %v224 = vsel %vm88, %v220, 0.0
    %v225 = vadd.f32 %v223, %v224
    %226 = vadd.xlane.f32.xlu0 %v225
    %v227 = vpop.xlane.xlu0 %226
    %v228 = vrot.slane %v227, 4
    %v229 = vadd.f32 %v227, %v228
    %v230 = vrot.slane %v229, 2
    %v231 = vadd.f32 %v229, %v230
    %v232 = vrot.slane %v231, 1
    %v233 = vadd.f32 %v231, %v232
    %s234 = vtos %v233
    %s235 = smul.f32 %s98, 3.0
    %s236 = ssub.f32 %s235, %s234
    %s237 = smul.f32 %s236, -0.2
    %s238 = sadd.f32 %s181, %s237
    %v239 = vstv %s238
    %240 = vst [vmem:[#allocation5] sm:$0xff] %v239
    // Predicated region
    $region22: #{tpu_custom_call.1} parent=1 // pred_check
      _
    $region23: #{tpu_custom_call.1} parent=1 // pred_check_branch
      %242 = sbr.rel (0) target = $region25
    $region24: #{tpu_custom_call.1} parent=1 // pred_region
      %244 = vsyncadd [#allocation4], 0
      %s246 = sshll.u32 [#allocation5], 4
      %s247 = int_to_ptr.vmem [resolvable:$true] %s246
      %s248 = sshll.u32 %s4, 4
      %s249 = int_to_ptr.hbm [resolvable:$true] %s248
      %251 = dma.vmem_to_hbm [thread:$0]  %s247, 128, %s249, [#allocation4]
    $region25: #{tpu_custom_call.1} parent=1 // pred_fallthru
      _
    // Predicated region
    $region26: #{tpu_custom_call.1} parent=1 // pred_check
      _
    $region27: #{tpu_custom_call.1} parent=1 // pred_check_branch
      %253 = sbr.rel (0) target = $region29
    $region28: #{tpu_custom_call.1} parent=1 // pred_region
      %255 = dma.done [#allocation4], 128
    $region29: #{tpu_custom_call.1} parent=1 // pred_fallthru
      _
    %256 = vsyncpa [#allocation3], 1
    %257 = vsyncpa [#allocation4], 1

</llo_original>
